<compile_context>
chip_gen: v7x
topology: tpu7x:2x2x1
jax: 0.10.0
libtpu: 0.0.40
codegen_flags: <defaults>
</compile_context>

<pallas_src>
import functools
import math

import jax
import jax.numpy as jnp
from jax import lax
from jax.experimental import pallas as pl
from jax.experimental.pallas import tpu as pltpu


CONV_CH = 32
K1, K2 = 129, 257
GROUP1, GROUP2 = 32, 16      # conv taps fused per grouped matmul (per layer)
HIDDEN = 1024
N_HEADS = 20                 # 9 (other) + 8 (ss8) + 3 (ss3) stacked 1x1 heads


# ----------------------------------------------------------------------------
# Small tiling helpers
# ----------------------------------------------------------------------------

def _round_up(x, m):
    return ((x + m - 1) // m) * m


def _pick_tile(dim, cap, align):
    """Largest tile <= cap that divides dim and is a multiple of align."""
    if dim <= cap:
        return dim
    for t in range(cap, align - 1, -1):
        if dim % t == 0 and t % align == 0:
            return t
    return dim


def _time_chunk(n, cap=64):
    """LSTM time-chunk: largest divisor of n <= cap, avoiding tiny chunks."""
    if n <= cap:
        return n
    best = 1
    for t in range(1, cap + 1):
        if n % t == 0:
            best = t
    if best >= max(8, cap // 4) or n > 1024:
        return best
    return n          # awkward (e.g. prime) modest n: one chunk, no grid churn


# ----------------------------------------------------------------------------
# Pallas kernels
# ----------------------------------------------------------------------------

def _resblock_kernel(*refs, group, kg, tile_n, has_proj):
    """Grouped-tap same-padded Conv1d + bias + ReLU + shortcut (one N-tile).

    y_ref : (n_rows, group*Cin) tap-grouped im2col slab (whole batch elem), bf16
    w_ref : (kg, group*Cin, Cout) grouped conv weight, bf16
    b_ref : (1, Cout) f32
    x_ref : (tile_n, Cin) f32 unpadded input tile (for the shortcut)
    p_ref : (Cin, Cout) bf16 shortcut projection (only when has_proj)
    o_ref : (tile_n, Cout) f32
    """
    if has_proj:
        y_ref, w_ref, b_ref, x_ref, p_ref, o_ref = refs
    else:
        y_ref, w_ref, b_ref, x_ref, o_ref = refs
        p_ref = None

    c_out = o_ref.shape[-1]
    row0 = pl.program_id(1) * tile_n            # tile_n is a multiple of group

    def tap(g, acc):
        base = pl.multiple_of(row0 + g * group, group)   # 16/32-aligned start
        xg = y_ref[pl.ds(base, tile_n), :]               # (tile_n, group*Cin)
        return acc + jnp.dot(xg, w_ref[g],
                             preferred_element_type=jnp.float32)

    # Accumulator stays in vregs across the (unrolled) tap loop.
    acc = lax.fori_loop(0, kg, tap,
                        jnp.zeros((tile_n, c_out), jnp.float32), unroll=True)

    h = jnp.maximum(acc + b_ref[...], 0.0)               # conv + bias + ReLU
    if has_proj:
        shortcut = jnp.dot(x_ref[...].astype(jnp.bfloat16), p_ref[...],
                           preferred_element_type=jnp.float32)
    else:
        shortcut = x_ref[...]                             # identity (Cin==Cout)
    o_ref[...] = (h + shortcut).astype(o_ref.dtype)


def _matmul_bias_kernel(x_ref, w_ref, b_ref, o_ref, *, parts):
    """o = sum_p x[p] @ w[p] + b; bf16 operands, f32 accumulation, bf16 out.

    x_ref : (parts, tm, K) bf16, w_ref : (parts, K, tn) bf16,
    b_ref : (1, tn) f32, o_ref : (tm, tn) bf16.
    The `parts` split removes the HBM concat of the two LSTM directions.
    """
    acc = jnp.dot(x_ref[0], w_ref[0], preferred_element_type=jnp.float32)
    for p in range(1, parts):
        acc = acc + jnp.dot(x_ref[p], w_ref[p],
                            preferred_element_type=jnp.float32)
    o_ref[...] = (acc + b_ref[...]).astype(o_ref.dtype)


def _lstm_dir_kernel(xg_ref, whh_hbm, o_ref, whh_vmem, h_sc, c_sc, dma_sem,
                     *, hidden, t_chunk, unroll):
    """One LSTM direction, streamed over time chunks (grid = (2 dirs, NC)).

    xg_ref   : (T, B, 4H) bf16 gate pre-activations for this direction's chunk
    whh_hbm  : (2, H, 4H) bf16 recurrent weights (HBM; per-dir half -> VMEM)
    o_ref    : (T, B, H) bf16 hidden outputs for this chunk
    The backward direction (d == 1) gets chunk NC-1-s and reverses time
    in-kernel, so no HBM [::-1] passes are needed.
    """
    d = pl.program_id(0)
    s = pl.program_id(1)

    @pl.when(s == 0)
    def _():
        cp = pltpu.make_async_copy(whh_hbm.at[d], whh_vmem, dma_sem.at[0])
        cp.start()
        h_sc[...] = jnp.zeros_like(h_sc)
        c_sc[...] = jnp.zeros_like(c_sc)
        cp.wait()

    def step(i, carry):
        h_prev, c_prev = carry
        t = jnp.where(d == 0, i, t_chunk - 1 - i)        # in-kernel reversal
        g = xg_ref[t].astype(jnp.float32) + jnp.dot(
            h_prev.astype(jnp.bfloat16), whh_vmem[...],
            preferred_element_type=jnp.float32)
        i_g = jax.nn.sigmoid(g[:, 0 * hidden:1 * hidden])
        f_g = jax.nn.sigmoid(g[:, 1 * hidden:2 * hidden])
        g_g = jnp.tanh(g[:, 2 * hidden:3 * hidden])
        o_g = jax.nn.sigmoid(g[:, 3 * hidden:4 * hidden])
        c = f_g * c_prev + i_g * g_g
        h = o_g * jnp.tanh(c)
        o_ref[t] = h.astype(o_ref.dtype)
        return (h, c)

    # h/c carried in vregs across the chunk; scratch read/written once.
    h_fin, c_fin = lax.fori_loop(0, t_chunk, step, (h_sc[...], c_sc[...]),
                                 unroll=unroll)
    h_sc[...] = h_fin
    c_sc[...] = c_fin


def _heads_kernel(h_ref, w_ref, b_ref, m_ref, o_ref):
    """Fused 1x1-conv heads with masking, lane-dense (N*B) output columns.

    h_ref : (2, tm, H) bf16 (fwd/bwd halves kept separate — no concat),
    w_ref : (2, 20, H) bf16, b_ref : (20, 1) f32, m_ref : (1, tm) f32,
    o_ref : (20, tm) f32.
    """
    y = lax.dot_general(w_ref[0], h_ref[0],
                        dimension_numbers=(((1,), (1,)), ((), ())),
                        preferred_element_type=jnp.float32)
    y = y + lax.dot_general(w_ref[1], h_ref[1],
                            dimension_numbers=(((1,), (1,)), ((), ())),
                            preferred_element_type=jnp.float32)
    o_ref[...] = ((y + b_ref[...]) * m_ref[...]).astype(o_ref.dtype)


# ----------------------------------------------------------------------------
# Wrappers (padding, tap grouping, parameter plumbing)
# ----------------------------------------------------------------------------

def resblock(x_bnc, p, k_taps, has_proj):
    """x_bnc: (B, N, Cin) -> (B, N, Cout)."""
    b_sz, n, c_in = x_bnc.shape
    kg, gcin, c_out = p["w"].shape
    group = gcin // c_in
    pad = k_taps // 2
    extra = kg * group - k_taps                # zero-weight taps padded on K

    tile_n = min(256, _round_up(n, group))     # multiple of group (16/32)
    n_pad = _round_up(n, tile_n)
    xb = x_bnc if n_pad == n else jnp.pad(x_bnc, ((0, 0), (0, n_pad - n),
                                                  (0, 0)))

    xp = jnp.pad(xb, ((0, 0), (pad, pad + extra), (0, 0)))
    n_rows = n_pad + (kg - 1) * group
    # Tap-grouped im2col: y[b, m, r*Cin + c] = xp[b, m + r, c]
    y = jnp.stack([xp[:, r:r + n_rows, :] for r in range(group)], axis=2)
    y = y.reshape(b_sz, n_rows, gcin).astype(jnp.bfloat16)

    kernel = functools.partial(_resblock_kernel, group=group, kg=kg,
                               tile_n=tile_n, has_proj=has_proj)
    in_specs = [
        pl.BlockSpec((None, n_rows, gcin), lambda b, i: (b, 0, 0)),
        pl.BlockSpec((kg, gcin, c_out), lambda b, i: (0, 0, 0)),
        pl.BlockSpec((1, c_out), lambda b, i: (0, 0)),
        pl.BlockSpec((None, tile_n, c_in), lambda b, i: (b, i, 0)),
    ]
    args = [y, p["w"], p["b"], xb]
    if has_proj:
        in_specs.append(pl.BlockSpec((c_in, c_out), lambda b, i: (0, 0)))
        args.append(p["proj"])

    out = pl.pallas_call(
        kernel,
        out_shape=jax.ShapeDtypeStruct((b_sz, n_pad, c_out), jnp.float32),
        grid_spec=pltpu.PrefetchScalarGridSpec(
            num_scalar_prefetch=0,
            grid=(b_sz, n_pad // tile_n),
            in_specs=in_specs,
            out_specs=pl.BlockSpec((None, tile_n, c_out),
                                   lambda b, i: (b, i, 0)),
        ),
        compiler_params=pltpu.CompilerParams(
            dimension_semantics=("parallel", "parallel"),
            vmem_limit_bytes=48 * 1024 * 1024),
    )(*args)
    return out[:, :n] if n_pad != n else out


def matmul_bias(x_parts, w_parts, b):
    """x: (P, M, K) bf16, w: (P, K, 8H) bf16, b: (1, 8H) f32 -> (M, 8H) bf16."""
    parts, m, k = x_parts.shape
    pdim = w_parts.shape[2]
    tm = min(512, _round_up(m, 8))
    m_pad = _round_up(m, tm)
    if m_pad != m:
        x_parts = jnp.pad(x_parts, ((0, 0), (0, m_pad - m), (0, 0)))
    tn = _pick_tile(pdim, 1024, 128)

    out = pl.pallas_call(
        functools.partial(_matmul_bias_kernel, parts=parts),
        out_shape=jax.ShapeDtypeStruct((m_pad, pdim), jnp.bfloat16),
        grid_spec=pltpu.PrefetchScalarGridSpec(
            num_scalar_prefetch=0,
            grid=(m_pad // tm, pdim // tn),
            in_specs=[
                pl.BlockSpec((parts, tm, k), lambda i, j: (0, i, 0)),
                pl.BlockSpec((parts, k, tn), lambda i, j: (0, 0, j)),
                pl.BlockSpec((1, tn), lambda i, j: (0, j)),
            ],
            out_specs=pl.BlockSpec((tm, tn), lambda i, j: (i, j)),
        ),
        compiler_params=pltpu.CompilerParams(
            dimension_semantics=("parallel", "parallel"),
            vmem_limit_bytes=48 * 1024 * 1024),
    )(x_parts, w_parts, b)
    return out[:m] if m_pad != m else out


def bilstm(x_parts, p, n, b_sz):
    """Bidirectional LSTM.

    x_parts : (P, N*B, F_p) bf16 — P=1 for layer 1, P=2 (fwd/bwd halves of the
              previous layer) for layer 2.
    Returns (2, N, B, H) bf16 (direction-major; never concatenated in HBM).
    """
    hidden = p["whh"].shape[1]

    # Input projection for BOTH directions in one tiled matmul.
    xg = matmul_bias(x_parts, p["wih"], p["bias"])        # (N*B, 8H) bf16
    xg = xg.reshape(n, b_sz, 8 * hidden)

    t_chunk = _time_chunk(n, 64)
    nc = n // t_chunk
    unroll = 4 if t_chunk % 4 == 0 else (2 if t_chunk % 2 == 0 else 1)

    def chunk_idx(d, s):                 # fwd: s; bwd: nc-1-s (branchless)
        return s + d * (nc - 1 - 2 * s)

    out = pl.pallas_call(
        functools.partial(_lstm_dir_kernel, hidden=hidden,
                          t_chunk=t_chunk, unroll=unroll),
        out_shape=jax.ShapeDtypeStruct((2, n, b_sz, hidden), jnp.bfloat16),
        grid_spec=pltpu.PrefetchScalarGridSpec(
            num_scalar_prefetch=0,
            grid=(2, nc),
            in_specs=[
                # gate pre-activations: chunk chunk_idx(d,s), columns d*4H..
                pl.BlockSpec((t_chunk, b_sz, 4 * hidden),
                             lambda d, s: (chunk_idx(d, s), 0, d)),
                # recurrent weights stay in HBM; per-dir half copied once
                pl.BlockSpec(memory_space=pl.ANY),
            ],
            out_specs=pl.BlockSpec((None, t_chunk, b_sz, hidden),
                                   lambda d, s: (d, chunk_idx(d, s), 0, 0)),
            scratch_shapes=[
                pltpu.VMEM((hidden, 4 * hidden), jnp.bfloat16),   # W_hh[d]
                pltpu.VMEM((b_sz, hidden), jnp.float32),          # h state
                pltpu.VMEM((b_sz, hidden), jnp.float32),          # c state
                pltpu.SemaphoreType.DMA((1,)),
            ],
        ),
        compiler_params=pltpu.CompilerParams(
            dimension_semantics=("parallel", "arbitrary"),
            vmem_limit_bytes=40 * 1024 * 1024),
    )(xg, p["whh"])
    return out


def heads_call(h_parts, mask_flat, p):
    """h_parts: (2, N*B, H) bf16, mask_flat: (1, N*B) f32 -> (20, N*B) f32."""
    _, m, hdim = h_parts.shape
    n_out = p["w"].shape[1]
    tm = min(512, _round_up(m, 128))
    m_pad = _round_up(m, tm)
    if m_pad != m:
        h_parts = jnp.pad(h_parts, ((0, 0), (0, m_pad - m), (0, 0)))
        mask_flat = jnp.pad(mask_flat, ((0, 0), (0, m_pad - m)))

    out = pl.pallas_call(
        _heads_kernel,
        out_shape=jax.ShapeDtypeStruct((n_out, m_pad), jnp.float32),
        grid_spec=pltpu.PrefetchScalarGridSpec(
            num_scalar_prefetch=0,
            grid=(m_pad // tm,),
            in_specs=[
                pl.BlockSpec((2, tm, hdim), lambda j: (0, j, 0)),
                pl.BlockSpec((2, n_out, hdim), lambda j: (0, 0, 0)),
                pl.BlockSpec((n_out, 1), lambda j: (0, 0)),
                pl.BlockSpec((1, tm), lambda j: (0, j)),
            ],
            out_specs=pl.BlockSpec((n_out, tm), lambda j: (0, j)),
        ),
        compiler_params=pltpu.CompilerParams(
            dimension_semantics=("parallel",)),
    )(h_parts, p["w"], p["b"], mask_flat)
    return out[:, :m] if m_pad != m else out


# ----------------------------------------------------------------------------
# Model: parameters + forward
# ----------------------------------------------------------------------------

def _uniform(key, shape, scale):
    return jax.random.uniform(key, shape, jnp.float32, -scale, scale)


def init_params(key, in_channels):
    keys = iter(jax.random.split(key, 64))

    def conv_block(c_in, c_out, k, group, with_proj):
        s = 1.0 / math.sqrt(c_in * k)
        kg = -(-k // group)
        w = _uniform(next(keys), (k, c_in, c_out), s)          # (K, Cin, Cout)
        w = jnp.pad(w, ((0, kg * group - k), (0, 0), (0, 0)))
        w = w.reshape(kg, group * c_in, c_out).astype(jnp.bfloat16)
        b = _uniform(next(keys), (1, c_out), s)
        blk = {"w": w, "b": b}
        if with_proj:
            blk["proj"] = _uniform(next(keys), (c_in, c_out),
                                   1.0 / math.sqrt(c_in)).astype(jnp.bfloat16)
        return blk

    def lstm_block(input_size, hidden, parts):
        # NOTE for real torch checkpoints: torch stores W_ih/W_hh as
        # (4H, in)/(4H, H) with i,f,g,o gate order — transpose to (in, 4H),
        # concat fwd|bwd along the output axis, and split the input axis into
        # `parts` equal K-chunks ([fwd-half, bwd-half] of the previous layer).
        s = 1.0 / math.sqrt(hidden)
        k_p = input_size // parts
        wih_f = _uniform(next(keys), (input_size, 4 * hidden), s)
        wih_b = _uniform(next(keys), (input_size, 4 * hidden), s)
        wih = jnp.concatenate([wih_f, wih_b], 1)               # (in, 8H)
        wih = wih.reshape(parts, k_p, 8 * hidden).astype(jnp.bfloat16)
        whh_f = _uniform(next(keys), (hidden, 4 * hidden), s)
        whh_b = _uniform(next(keys), (hidden, 4 * hidden), s)
        bias_f = (_uniform(next(keys), (1, 4 * hidden), s)
                  + _uniform(next(keys), (1, 4 * hidden), s))   # b_ih + b_hh
        bias_b = (_uniform(next(keys), (1, 4 * hidden), s)
                  + _uniform(next(keys), (1, 4 * hidden), s))
        return {
            "wih": wih,
            "whh": jnp.stack([whh_f, whh_b], 0).astype(jnp.bfloat16),
            "bias": jnp.concatenate([bias_f, bias_b], 1),
        }

    # Heads weight stored as (2, 20, H): part 0 multiplies the forward half,
    # part 1 the backward half (== w[:, :H] / w[:, H:] of a (20, 2H) weight).
    s_head = 1.0 / math.sqrt(2 * HIDDEN)
    heads_w = _uniform(next(keys), (2, N_HEADS, HIDDEN), s_head)
    return {
        "conv1": conv_block(in_channels, CONV_CH, K1, GROUP1, with_proj=True),
        "conv2": conv_block(CONV_CH, CONV_CH, K2, GROUP2, with_proj=False),
        "lstm1": lstm_block(CONV_CH + in_channels, HIDDEN, parts=1),
        "lstm2": lstm_block(2 * HIDDEN, HIDDEN, parts=2),
        "heads": {"w": heads_w.astype(jnp.bfloat16),
                  "b": _uniform(next(keys), (N_HEADS, 1), s_head)},
    }


def netsurfp2_forward(params, x, is_empty=None):
    """x: (B, in_channels, N) float32 (PyTorch NCW layout)."""
    b_sz, _, n = x.shape
    if is_empty is None:
        is_empty = (jnp.max(x, axis=1, keepdims=True) != 0).astype(jnp.float32)
    else:
        is_empty = is_empty.astype(jnp.float32)

    x_bnc = jnp.transpose(x, (0, 2, 1))                        # (B, N, C)
    h = resblock(x_bnc, params["conv1"], K1, has_proj=True)    # (B, N, 32)
    h = resblock(h, params["conv2"], K2, has_proj=False)       # (B, N, 32)
    h = jnp.concatenate([x_bnc, h], axis=-1)                   # cat([x, h], 1)
    h = jnp.transpose(h, (1, 0, 2))                            # (N, B, C+32)

    lstm1_in = h.reshape(1, n * b_sz, -1).astype(jnp.bfloat16)
    h12 = bilstm(lstm1_in, params["lstm1"], n, b_sz)           # (2, N, B, H)
    lstm2_in = h12.reshape(2, n * b_sz, HIDDEN)
    h22 = bilstm(lstm2_in, params["lstm2"], n, b_sz)           # (2, N, B, H)

    # Heads: contract the 2x1024 features against (N*B); no (B, 2048, N)
    # transpose / fwd-bwd concat is materialized, output lane-dense on N*B.
    h_flat = h22.reshape(2, n * b_sz, HIDDEN)
    mask_flat = jnp.transpose(is_empty[:, 0, :], (1, 0)).reshape(1, n * b_sz)
    out = heads_call(h_flat, mask_flat, params["heads"])       # (20, N*B)
    out = jnp.transpose(out.reshape(N_HEADS, n, b_sz), (2, 0, 1))  # (B, 20, N)

    h_other = out[:, 0:9]
    h_ss8 = out[:, 9:17]
    h_ss3 = out[:, 17:20]
    return h_other, h_ss8, h_ss3


# ----------------------------------------------------------------------------

if __name__ == "__main__":
    key = jax.random.PRNGKey(0)
    B, C, N = 2, 4, 16

    params = init_params(key, in_channels=C)
    x = jax.random.normal(jax.random.fold_in(key, 999), (B, C, N),
                          dtype=jnp.float32)

    h_other, h_ss8, h_ss3 = netsurfp2_forward(params, x)
    jax.block_until_ready((h_other, h_ss8, h_ss3))

    assert h_other.shape == (B, 9, N) and h_other.dtype == jnp.float32
    assert h_ss8.shape == (B, 8, N) and h_ss8.dtype == jnp.float32
    assert h_ss3.shape == (B, 3, N) and h_ss3.dtype == jnp.float32
    assert bool(jnp.all(jnp.isfinite(h_other)))
    assert bool(jnp.all(jnp.isfinite(h_ss8)))
    assert bool(jnp.all(jnp.isfinite(h_ss3)))

    print("KERNEL_OK")
</pallas_src>

<mosaic_0001>
module attributes {stable_mosaic.version = 11 : i64} {
  func.func @_resblock_kernel(%arg0: i32, %arg1: i32, %arg2: memref<1x160x128xbf16, #tpu.memory_space<vmem>>, %arg3: memref<5x128x32xbf16, #tpu.memory_space<vmem>>, %arg4: memref<1x32xf32, #tpu.memory_space<vmem>>, %arg5: memref<1x32x4xf32, #tpu.memory_space<vmem>>, %arg6: memref<4x32xbf16, #tpu.memory_space<vmem>>, %arg7: memref<1x32x32xf32, #tpu.memory_space<vmem>>) attributes {dimension_semantics = [#tpu.dimension_semantics<parallel>, #tpu.dimension_semantics<parallel>], iteration_bounds = array<i64: 2, 1>, scalar_prefetch = 0 : i64, scratch_operands = 0 : i64, tpu.core_type = #tpu.core_type<tc>, window_params = [{transform_indices = @transform_0, window_bounds = array<i64: 1, 160, 128>}, {pipeline_mode = #tpu.pipeline_mode<synchronous>, transform_indices = @transform_1, window_bounds = array<i64: 5, 128, 32>}, {pipeline_mode = #tpu.pipeline_mode<synchronous>, transform_indices = @transform_2, window_bounds = array<i64: 1, 32>}, {transform_indices = @transform_3, window_bounds = array<i64: 1, 32, 4>}, {pipeline_mode = #tpu.pipeline_mode<synchronous>, transform_indices = @transform_4, window_bounds = array<i64: 4, 32>}, {transform_indices = @transform_5, window_bounds = array<i64: 1, 32, 32>}]} {
    %c32_i32 = arith.constant 32 : i32
    %0 = arith.muli %arg1, %c32_i32 : i32
    %cst = arith.constant 0.000000e+00 : f32
    %1 = vector.broadcast %cst : f32 to vector<32x32xf32>
    %c0_i32 = arith.constant 0 : i32
    %c32_i32_0 = arith.constant 32 : i32
    %2 = arith.muli %c0_i32, %c32_i32_0 : i32
    %3 = arith.addi %0, %2 : i32
    %4 = tpu.assume_multiple %3, 32 : i32
    %c0 = arith.constant 0 : index
    %5 = arith.index_cast %4 : i32 to index
    %c0_1 = arith.constant 0 : index
    %6 = vector.load %arg2[%c0, %5, %c0_1] : memref<1x160x128xbf16, #tpu.memory_space<vmem>>, vector<1x32x128xbf16>
    %7 = vector.shape_cast %6 : vector<1x32x128xbf16> to vector<32x128xbf16>
    %8 = arith.index_cast %c0_i32 : i32 to index
    %c0_2 = arith.constant 0 : index
    %c0_3 = arith.constant 0 : index
    %9 = vector.load %arg3[%8, %c0_2, %c0_3] : memref<5x128x32xbf16, #tpu.memory_space<vmem>>, vector<1x128x32xbf16>
    %10 = vector.shape_cast %9 : vector<1x128x32xbf16> to vector<128x32xbf16>
    %cst_4 = arith.constant dense<0.000000e+00> : vector<32x32xf32>
    %11 = tpu.matmul %7, %10, %cst_4 {dimension_numbers = #tpu.dot_dimension_numbers<[1], [0], [0], [1], [0, 0, 1, 1], [], []>} : vector<32x128xbf16>, vector<128x32xbf16>, vector<32x32xf32> -> vector<32x32xf32>
    %12 = arith.addf %1, %11 : vector<32x32xf32>
    %c1_i32 = arith.constant 1 : i32
    %c32_i32_5 = arith.constant 32 : i32
    %13 = arith.muli %c1_i32, %c32_i32_5 : i32
    %14 = arith.addi %0, %13 : i32
    %15 = tpu.assume_multiple %14, 32 : i32
    %c0_6 = arith.constant 0 : index
    %16 = arith.index_cast %15 : i32 to index
    %c0_7 = arith.constant 0 : index
    %17 = vector.load %arg2[%c0_6, %16, %c0_7] : memref<1x160x128xbf16, #tpu.memory_space<vmem>>, vector<1x32x128xbf16>
    %18 = vector.shape_cast %17 : vector<1x32x128xbf16> to vector<32x128xbf16>
    %19 = arith.index_cast %c1_i32 : i32 to index
    %c0_8 = arith.constant 0 : index
    %c0_9 = arith.constant 0 : index
    %20 = vector.load %arg3[%19, %c0_8, %c0_9] : memref<5x128x32xbf16, #tpu.memory_space<vmem>>, vector<1x128x32xbf16>
    %21 = vector.shape_cast %20 : vector<1x128x32xbf16> to vector<128x32xbf16>
    %cst_10 = arith.constant dense<0.000000e+00> : vector<32x32xf32>
    %22 = tpu.matmul %18, %21, %cst_10 {dimension_numbers = #tpu.dot_dimension_numbers<[1], [0], [0], [1], [0, 0, 1, 1], [], []>} : vector<32x128xbf16>, vector<128x32xbf16>, vector<32x32xf32> -> vector<32x32xf32>
    %23 = arith.addf %12, %22 : vector<32x32xf32>
    %c2_i32 = arith.constant 2 : i32
    %c32_i32_11 = arith.constant 32 : i32
    %24 = arith.muli %c2_i32, %c32_i32_11 : i32
    %25 = arith.addi %0, %24 : i32
    %26 = tpu.assume_multiple %25, 32 : i32
    %c0_12 = arith.constant 0 : index
    %27 = arith.index_cast %26 : i32 to index
    %c0_13 = arith.constant 0 : index
    %28 = vector.load %arg2[%c0_12, %27, %c0_13] : memref<1x160x128xbf16, #tpu.memory_space<vmem>>, vector<1x32x128xbf16>
    %29 = vector.shape_cast %28 : vector<1x32x128xbf16> to vector<32x128xbf16>
    %30 = arith.index_cast %c2_i32 : i32 to index
    %c0_14 = arith.constant 0 : index
    %c0_15 = arith.constant 0 : index
    %31 = vector.load %arg3[%30, %c0_14, %c0_15] : memref<5x128x32xbf16, #tpu.memory_space<vmem>>, vector<1x128x32xbf16>
    %32 = vector.shape_cast %31 : vector<1x128x32xbf16> to vector<128x32xbf16>
    %cst_16 = arith.constant dense<0.000000e+00> : vector<32x32xf32>
    %33 = tpu.matmul %29, %32, %cst_16 {dimension_numbers = #tpu.dot_dimension_numbers<[1], [0], [0], [1], [0, 0, 1, 1], [], []>} : vector<32x128xbf16>, vector<128x32xbf16>, vector<32x32xf32> -> vector<32x32xf32>
    %34 = arith.addf %23, %33 : vector<32x32xf32>
    %c3_i32 = arith.constant 3 : i32
    %c32_i32_17 = arith.constant 32 : i32
    %35 = arith.muli %c3_i32, %c32_i32_17 : i32
    %36 = arith.addi %0, %35 : i32
    %37 = tpu.assume_multiple %36, 32 : i32
    %c0_18 = arith.constant 0 : index
    %38 = arith.index_cast %37 : i32 to index
    %c0_19 = arith.constant 0 : index
    %39 = vector.load %arg2[%c0_18, %38, %c0_19] : memref<1x160x128xbf16, #tpu.memory_space<vmem>>, vector<1x32x128xbf16>
    %40 = vector.shape_cast %39 : vector<1x32x128xbf16> to vector<32x128xbf16>
    %41 = arith.index_cast %c3_i32 : i32 to index
    %c0_20 = arith.constant 0 : index
    %c0_21 = arith.constant 0 : index
    %42 = vector.load %arg3[%41, %c0_20, %c0_21] : memref<5x128x32xbf16, #tpu.memory_space<vmem>>, vector<1x128x32xbf16>
    %43 = vector.shape_cast %42 : vector<1x128x32xbf16> to vector<128x32xbf16>
    %cst_22 = arith.constant dense<0.000000e+00> : vector<32x32xf32>
    %44 = tpu.matmul %40, %43, %cst_22 {dimension_numbers = #tpu.dot_dimension_numbers<[1], [0], [0], [1], [0, 0, 1, 1], [], []>} : vector<32x128xbf16>, vector<128x32xbf16>, vector<32x32xf32> -> vector<32x32xf32>
    %45 = arith.addf %34, %44 : vector<32x32xf32>
    %c4_i32 = arith.constant 4 : i32
    %c32_i32_23 = arith.constant 32 : i32
    %46 = arith.muli %c4_i32, %c32_i32_23 : i32
    %47 = arith.addi %0, %46 : i32
    %48 = tpu.assume_multiple %47, 32 : i32
    %c0_24 = arith.constant 0 : index
    %49 = arith.index_cast %48 : i32 to index
    %c0_25 = arith.constant 0 : index
    %50 = vector.load %arg2[%c0_24, %49, %c0_25] : memref<1x160x128xbf16, #tpu.memory_space<vmem>>, vector<1x32x128xbf16>
    %51 = vector.shape_cast %50 : vector<1x32x128xbf16> to vector<32x128xbf16>
    %52 = arith.index_cast %c4_i32 : i32 to index
    %c0_26 = arith.constant 0 : index
    %c0_27 = arith.constant 0 : index
    %53 = vector.load %arg3[%52, %c0_26, %c0_27] : memref<5x128x32xbf16, #tpu.memory_space<vmem>>, vector<1x128x32xbf16>
    %54 = vector.shape_cast %53 : vector<1x128x32xbf16> to vector<128x32xbf16>
    %cst_28 = arith.constant dense<0.000000e+00> : vector<32x32xf32>
    %55 = tpu.matmul %51, %54, %cst_28 {dimension_numbers = #tpu.dot_dimension_numbers<[1], [0], [0], [1], [0, 0, 1, 1], [], []>} : vector<32x128xbf16>, vector<128x32xbf16>, vector<32x32xf32> -> vector<32x32xf32>
    %56 = arith.addf %45, %55 : vector<32x32xf32>
    %c5_i32 = arith.constant 5 : i32
    %c0_29 = arith.constant 0 : index
    %c0_30 = arith.constant 0 : index
    %57 = vector.load %arg4[%c0_29, %c0_30] : memref<1x32xf32, #tpu.memory_space<vmem>>, vector<1x32xf32>
    %58 = vector.broadcast %57 : vector<1x32xf32> to vector<32x32xf32>
    %59 = arith.addf %56, %58 : vector<32x32xf32>
    %cst_31 = arith.constant 0.000000e+00 : f32
    %60 = vector.broadcast %cst_31 : f32 to vector<32x32xf32>
    %61 = arith.maximumf %59, %60 : vector<32x32xf32>
    %c0_32 = arith.constant 0 : index
    %c0_33 = arith.constant 0 : index
    %c0_34 = arith.constant 0 : index
    %62 = vector.load %arg5[%c0_32, %c0_33, %c0_34] : memref<1x32x4xf32, #tpu.memory_space<vmem>>, vector<1x32x4xf32>
    %63 = vector.shape_cast %62 : vector<1x32x4xf32> to vector<32x4xf32>
    %64 = arith.truncf %63 : vector<32x4xf32> to vector<32x4xbf16>
    %c0_35 = arith.constant 0 : index
    %c0_36 = arith.constant 0 : index
    %65 = vector.load %arg6[%c0_35, %c0_36] : memref<4x32xbf16, #tpu.memory_space<vmem>>, vector<4x32xbf16>
    %cst_37 = arith.constant dense<0.000000e+00> : vector<32x32xf32>
    %66 = tpu.matmul %64, %65, %cst_37 {dimension_numbers = #tpu.dot_dimension_numbers<[1], [0], [0], [1], [0, 0, 1, 1], [], []>} : vector<32x4xbf16>, vector<4x32xbf16>, vector<32x32xf32> -> vector<32x32xf32>
    %67 = arith.addf %61, %66 : vector<32x32xf32>
    %c0_38 = arith.constant 0 : index
    %c0_39 = arith.constant 0 : index
    %c0_40 = arith.constant 0 : index
    %68 = vector.load %arg7[%c0_38, %c0_39, %c0_40] : memref<1x32x32xf32, #tpu.memory_space<vmem>>, vector<1x32x32xf32>
    %69 = vector.shape_cast %68 : vector<1x32x32xf32> to vector<32x32xf32>
    %70 = vector.shape_cast %67 : vector<32x32xf32> to vector<1x32x32xf32>
    tpu.vector_store %arg7[%c0_38, %c0_39, %c0_40], %70 {strides = array<i32>} : memref<1x32x32xf32, #tpu.memory_space<vmem>>, vector<1x32x32xf32>,
    return
  }
  func.func @transform_0(%arg0: i32, %arg1: i32) -> (i32, i32, i32) {
    %c0_i32 = arith.constant 0 : i32
    %c0_i32_0 = arith.constant 0 : i32
    %c0_i32_1 = arith.constant 0 : i32
    return %arg0, %c0_i32, %c0_i32_0 : i32, i32, i32
  }
  func.func @transform_1(%arg0: i32, %arg1: i32) -> (i32, i32, i32) {
    %c0_i32 = arith.constant 0 : i32
    %c0_i32_0 = arith.constant 0 : i32
    %c0_i32_1 = arith.constant 0 : i32
    %c0_i32_2 = arith.constant 0 : i32
    return %c0_i32, %c0_i32_0, %c0_i32_1 : i32, i32, i32
  }
  func.func @transform_2(%arg0: i32, %arg1: i32) -> (i32, i32) {
    %c0_i32 = arith.constant 0 : i32
    %c0_i32_0 = arith.constant 0 : i32
    %c0_i32_1 = arith.constant 0 : i32
    return %c0_i32, %c0_i32_0 : i32, i32
  }
  func.func @transform_3(%arg0: i32, %arg1: i32) -> (i32, i32, i32) {
    %c0_i32 = arith.constant 0 : i32
    %c0_i32_0 = arith.constant 0 : i32
    return %arg0, %arg1, %c0_i32 : i32, i32, i32
  }
  func.func @transform_4(%arg0: i32, %arg1: i32) -> (i32, i32) {
    %c0_i32 = arith.constant 0 : i32
    %c0_i32_0 = arith.constant 0 : i32
    %c0_i32_1 = arith.constant 0 : i32
    return %c0_i32, %c0_i32_0 : i32, i32
  }
  func.func @transform_5(%arg0: i32, %arg1: i32) -> (i32, i32, i32) {
    %c0_i32 = arith.constant 0 : i32
    %c0_i32_0 = arith.constant 0 : i32
    return %arg0, %arg1, %c0_i32 : i32, i32, i32
  }
}

</mosaic_0001>

<llo_original>
// kernel: tpu_custom_call.1
$region0: #{tpu_custom_call.1}
  #allocation0 [shape = 'u32[]', space=smem, size = 0x4, offset = 0x4, fixed_abs, tag = 'smem constant byte address 0x4 - core index']
  #allocation1 [shape = 'u32[144,128]{1,0:T(1,128)}', space=vmem, size = 0x12000, scoped, tag = 'internal scratch']
  %s0 = inlined_call_operand.vmem [shape: bf16[2,160,128], index: 0, kind: input, shape index: {}]
  %s1 = inlined_call_operand.vmem [shape: bf16[5,128,32], index: 1, kind: input, shape index: {}]
  %s2 = inlined_call_operand.vmem [shape: f32[1,32], index: 2, kind: input, shape index: {}]
  %s3 = inlined_call_operand.vmem [shape: f32[2,32,4], index: 3, kind: input, shape index: {}]
  %s4 = inlined_call_operand.vmem [shape: bf16[4,32], index: 4, kind: input, shape index: {}]
  %s5 = inlined_call_operand.hbm [shape: f32[2,32,32], index: 5, kind: output, shape index: {}]
  %s6 = sld [smem:[#allocation0]]
  $region53: #{tpu_custom_call.1} parent=0
    _
  %s8 = ssub.s32 1, %s6
  %s9 = scalar_select 0, %s8, %s6
  $region1: #{tpu_custom_call.1} parent=0
    #allocation2 [shape = 'u8[32768]{0}', space=vmem, size = 0x8000, scoped, tag = 'output window, operand 0']
    #allocation3 [shape = 's32[2]{0}', space=sflag, size = 0x8, scoped, tag = 'scoped memory for tpu_custom_call.1']
    %10 = vsyncpa [#allocation3], 0
    %s11 = scalar_lea.sflag [#allocation3], 1
    %12 = vsyncpa %s11, 0
    loop: start=0, step=1, limit=4
    $region2: #{tpu_custom_call.1} parent=1 // loop_pre_header
      _
    $region3: #{tpu_custom_call.1} parent=1 // loop_header
      %s14 = sphi 0, %s18
      %p15 = scmp.ge.s32.totalorder %s14, 4
      %s21 = sphi 0, %s33
      %s22 = sphi 0, %s29
      %s23 = sphi 0, %s21
      %s24 = sphi 0, %s22
      %s25 = sphi 0, %s23
      %s26 = sphi 0, %s24
      %s36 = sphi 0, %s38
      %s39 = sphi 0, %s36
      %s40 = sphi 0, %s39
      %s56 = sphi 0, %s40
      %s60 = sphi 0, %s60
      %s62 = sphi 0, %s60
      %s63 = sphi 0, %s62
      %s77 = sphi 0, %s63
      %s81 = sphi 0, %s81
      %s83 = sphi 0, %s81
      %s84 = sphi 0, %s83
      %s98 = sphi 0, %s84
      %s106 = sphi 0, %s108
      %s109 = sphi 0, %s106
      %s110 = sphi 0, %s109
      %s126 = sphi 0, %s110
      %s130 = sphi 0, %s130
      %s132 = sphi 0, %s130
      %s133 = sphi 0, %s132
      %s147 = sphi 0, %s133
      %s155 = sphi 0, %s157
      %s158 = sphi 0, %s155
      %s159 = sphi 0, %s158
      %s175 = sphi 0, %s159
    $region4: #{tpu_custom_call.1} parent=1 // loop_header_branch
      %17 = sbr.rel (%p15) target = $region8
    $region5: #{tpu_custom_call.1} parent=1 // loop_body
      %s19 = ssub.s32 %s14, 1
      %s20 = ssub.s32 %s14, 2
      %s27 = sadd.s32 1, %s22
      %p28 = scmp.ge.s32.totalorder %s27, 1
      %s29 = scalar_select %p28, 0, %s27
      %s30 = sadd.s32 1, %s21
      %s31 = scalar_select %p28, %s30, %s21
      %p32 = scmp.ge.s32.totalorder %s31, 2
      %s33 = scalar_select %p32, 0, %s31
      %s34 = ssub.s32 %s21, %s33
      %p35 = scmp.eq.s32.totalorder %s34, 0
      %s37 = sadd.s32 %s36, 1
      %s38 = scalar_select %p35, %s36, %s37
      %p41 = pneg %p35
      %p42 = scmp.eq.s32.totalorder %s14, 1
      %p43 = por %p41, %p42
      %p44 = scmp.ne.s32.totalorder %s36, %s39
      %p45 = scmp.eq.s32.totalorder %s14, 0
      %p46 = por %p44, %p45
      %p47 = scmp.ne.s32.totalorder %s36, %s39
      %p48 = scmp.eq.s32.totalorder %s19, 1
      %p49 = por %p47, %p48
      %p50 = scmp.ne.s32.totalorder %s39, %s40
      %p51 = scmp.eq.s32.totalorder %s19, 0
      %p52 = por %p50, %p51
      %p53 = scmp.ne.s32.totalorder %s39, %s40
      %p54 = scmp.eq.s32.totalorder %s20, 1
      %p55 = por %p53, %p54
      %p57 = scmp.ne.s32.totalorder %s40, %s56
      %p58 = scmp.eq.s32.totalorder %s20, 0
      %p59 = por %p57, %p58
      %s61 = sadd.s32 %s60, 1
      %p64 = scmp.eq.s32.totalorder %s14, 1
      %p65 = scmp.ne.s32.totalorder %s60, %s62
      %p66 = scmp.eq.s32.totalorder %s14, 0
      %p67 = por %p65, %p66
      %p68 = scmp.ne.s32.totalorder %s60, %s62
      %p69 = scmp.eq.s32.totalorder %s19, 1
      %p70 = por %p68, %p69
      %p71 = scmp.ne.s32.totalorder %s62, %s63
      %p72 = scmp.eq.s32.totalorder %s19, 0
      %p73 = por %p71, %p72
      %p74 = scmp.ne.s32.totalorder %s62, %s63
      %p75 = scmp.eq.s32.totalorder %s20, 1
      %p76 = por %p74, %p75
      %p78 = scmp.ne.s32.totalorder %s63, %s77
      %p79 = scmp.eq.s32.totalorder %s20, 0
      %p80 = por %p78, %p79
      %s82 = sadd.s32 %s81, 1
      %p85 = scmp.eq.s32.totalorder %s14, 1
      %p86 = scmp.ne.s32.totalorder %s81, %s83
      %p87 = scmp.eq.s32.totalorder %s14, 0
      %p88 = por %p86, %p87
      %p89 = scmp.ne.s32.totalorder %s81, %s83
      %p90 = scmp.eq.s32.totalorder %s19, 1
      %p91 = por %p89, %p90
      %p92 = scmp.ne.s32.totalorder %s83, %s84
      %p93 = scmp.eq.s32.totalorder %s19, 0
      %p94 = por %p92, %p93
      %p95 = scmp.ne.s32.totalorder %s83, %s84
      %p96 = scmp.eq.s32.totalorder %s20, 1
      %p97 = por %p95, %p96
      %p99 = scmp.ne.s32.totalorder %s84, %s98
      %p100 = scmp.eq.s32.totalorder %s20, 0
      %p101 = por %p99, %p100
      %s102 = ssub.s32 %s21, %s33
      %s103 = ssub.s32 %s22, %s29
      %s104 = sor.u32 %s102, %s103
      %p105 = scmp.eq.s32.totalorder %s104, 0
      %s107 = sadd.s32 %s106, 1
      %s108 = scalar_select %p105, %s106, %s107
      %p111 = pneg %p105
      %p112 = scmp.eq.s32.totalorder %s14, 1
      %p113 = por %p111, %p112
      %p114 = scmp.ne.s32.totalorder %s106, %s109
      %p115 = scmp.eq.s32.totalorder %s14, 0
      %p116 = por %p114, %p115
      %p117 = scmp.ne.s32.totalorder %s106, %s109
      %p118 = scmp.eq.s32.totalorder %s19, 1
      %p119 = por %p117, %p118
      %p120 = scmp.ne.s32.totalorder %s109, %s110
      %p121 = scmp.eq.s32.totalorder %s19, 0
      %p122 = por %p120, %p121
      %p123 = scmp.ne.s32.totalorder %s109, %s110
      %p124 = scmp.eq.s32.totalorder %s20, 1
      %p125 = por %p123, %p124
      %p127 = scmp.ne.s32.totalorder %s110, %s126
      %p128 = scmp.eq.s32.totalorder %s20, 0
      %p129 = por %p127, %p128
      %s131 = sadd.s32 %s130, 1
      %p134 = scmp.eq.s32.totalorder %s14, 1
      %p135 = scmp.ne.s32.totalorder %s130, %s132
      %p136 = scmp.eq.s32.totalorder %s14, 0
      %p137 = por %p135, %p136
      %p138 = scmp.ne.s32.totalorder %s130, %s132
      %p139 = scmp.eq.s32.totalorder %s19, 1
      %p140 = por %p138, %p139
      %p141 = scmp.ne.s32.totalorder %s132, %s133
      %p142 = scmp.eq.s32.totalorder %s19, 0
      %p143 = por %p141, %p142
      %p144 = scmp.ne.s32.totalorder %s132, %s133
      %p145 = scmp.eq.s32.totalorder %s20, 1
      %p146 = por %p144, %p145
      %p148 = scmp.ne.s32.totalorder %s133, %s147
      %p149 = scmp.eq.s32.totalorder %s20, 0
      %p150 = por %p148, %p149
      %s151 = ssub.s32 %s21, %s33
      %s152 = ssub.s32 %s22, %s29
      %s153 = sor.u32 %s151, %s152
      %p154 = scmp.eq.s32.totalorder %s153, 0
      %s156 = sadd.s32 %s155, 1
      %s157 = scalar_select %p154, %s155, %s156
      %p160 = pneg %p154
      %p161 = scmp.eq.s32.totalorder %s14, 1
      %p162 = por %p160, %p161
      %p163 = scmp.ne.s32.totalorder %s155, %s158
      %p164 = scmp.eq.s32.totalorder %s14, 0
      %p165 = por %p163, %p164
      %p166 = scmp.ne.s32.totalorder %s155, %s158
      %p167 = scmp.eq.s32.totalorder %s19, 1
      %p168 = por %p166, %p167
      %p169 = scmp.ne.s32.totalorder %s158, %s159
      %p170 = scmp.eq.s32.totalorder %s19, 0
      %p171 = por %p169, %p170
      %p172 = scmp.ne.s32.totalorder %s158, %s159
      %p173 = scmp.eq.s32.totalorder %s20, 1
      %p174 = por %p172, %p173
      %p176 = scmp.ne.s32.totalorder %s159, %s175
      %p177 = scmp.eq.s32.totalorder %s20, 0
      %p178 = por %p176, %p177
      %p179 = scmp.le.s32.totalorder 1, %s14
      %p180 = scmp.lt.s32.totalorder %s14, 3
      %p181 = pnand %p179, %p180
      %p182 = pneg %p181
      // Predicated region
      $region9: #{tpu_custom_call.1} parent=5 // pred_check
        _
      $region10: #{tpu_custom_call.1} parent=5 // pred_check_branch
        %184 = sbr.rel (%p181) target = $region12
      $region11: #{tpu_custom_call.1} parent=5 // pred_region
        %s185 = ssub.s32 %s14, 1
        // Predicated region
        $region13: #{tpu_custom_call.1} parent=11 // pred_check
          %p186 = pneg %p73
        $region14: #{tpu_custom_call.1} parent=11 // pred_check_branch
          %188 = sbr.rel (%p186) target = $region16
        $region15: #{tpu_custom_call.1} parent=11 // pred_region
          _
        $region16: #{tpu_custom_call.1} parent=11 // pred_fallthru
          _
        // Predicated region
        $region17: #{tpu_custom_call.1} parent=11 // pred_check
          %p189 = pneg %p94
        $region18: #{tpu_custom_call.1} parent=11 // pred_check_branch
          %191 = sbr.rel (%p189) target = $region20
        $region19: #{tpu_custom_call.1} parent=11 // pred_region
          _
        $region20: #{tpu_custom_call.1} parent=11 // pred_fallthru
          _
        // Predicated region
        $region21: #{tpu_custom_call.1} parent=11 // pred_check
          %p192 = pneg %p143
        $region22: #{tpu_custom_call.1} parent=11 // pred_check_branch
          %194 = sbr.rel (%p192) target = $region24
        $region23: #{tpu_custom_call.1} parent=11 // pred_region
          _
        $region24: #{tpu_custom_call.1} parent=11 // pred_fallthru
          _
      $region12: #{tpu_custom_call.1} parent=5 // pred_fallthru
        _
      %p195 = scmp.lt.s32.totalorder %s14, 2
      // Predicated region
      $region25: #{tpu_custom_call.1} parent=5 // pred_check
        %p196 = pneg %p195
      $region26: #{tpu_custom_call.1} parent=5 // pred_check_branch
        %198 = sbr.rel (%p196) target = $region28
      $region27: #{tpu_custom_call.1} parent=5 // pred_region
        // Predicated region
        $region29: #{tpu_custom_call.1} parent=27 // pred_check
          %p199 = pneg %p46
        $region30: #{tpu_custom_call.1} parent=27 // pred_check_branch
          %201 = sbr.rel (%p199) target = $region32
        $region31: #{tpu_custom_call.1} parent=27 // pred_region
          %p202 = scmp.lt.s32.totalorder %s21, 1
          %s203 = scalar_select %p202, %s21, 1
          %s204 = smul.addr %s203, 20
          %s205 = smul.addr %s204, 4
          %s206 = scalar_lea.vmem %s0, %s205
        $region32: #{tpu_custom_call.1} parent=27 // pred_fallthru
          _
        // Predicated region
        $region33: #{tpu_custom_call.1} parent=27 // pred_check
          %p207 = pneg %p116
        $region34: #{tpu_custom_call.1} parent=27 // pred_check_branch
          %209 = sbr.rel (%p207) target = $region36
        $region35: #{tpu_custom_call.1} parent=27 // pred_region
          %s210 = smul.u32 4, %s22
          %p211 = scmp.lt.s32.totalorder %s21, 1
          %s212 = scalar_select %p211, %s21, 1
          %p213 = scmp.lt.s32.totalorder %s210, 3
          %s214 = scalar_select %p213, %s210, 3
          %s215 = smul.addr %s212, 4
          %s216 = sadd.s32 %s214, %s215
          %s217 = smul.addr %s216, 8
          %s218 = scalar_lea.vmem %s3, %s217
          %s219 = smul.u32 4, %s22
        $region36: #{tpu_custom_call.1} parent=27 // pred_fallthru
          _
      $region28: #{tpu_custom_call.1} parent=5 // pred_fallthru
        _
      %p220 = scmp.le.s32.totalorder 1, %s14
      %p221 = scmp.lt.s32.totalorder %s14, 3
      %p222 = pnand %p220, %p221
      %p223 = pneg %p222
      // Predicated region
      $region37: #{tpu_custom_call.1} parent=5 // pred_check
        _
      $region38: #{tpu_custom_call.1} parent=5 // pred_check_branch
        %225 = sbr.rel (%p222) target = $region40
      $region39: #{tpu_custom_call.1} parent=5 // pred_region
        %s226 = ssub.s32 %s14, 1
        %p227 = scmp.lt.s32.totalorder %s23, 1
        %s228 = scalar_select %p227, %s23, 1
        %s229 = smul.addr %s228, 20
        %s230 = smul.addr %s229, 4
        %s231 = scalar_lea.vmem %s0, %s230
        %p232 = pneg %p52
        %p233 = pneg %p49
        %p234 = pneg %p73
        %p235 = pneg %p70
        %p236 = pneg %p94
        %p237 = pneg %p91
        %s238 = smul.u32 4, %s24
        %p239 = scmp.lt.s32.totalorder %s23, 1
        %s240 = scalar_select %p239, %s23, 1
        %p241 = scmp.lt.s32.totalorder %s238, 3
        %s242 = scalar_select %p241, %s238, 3
        %s243 = smul.addr %s240, 4
        %s244 = sadd.s32 %s242, %s243
        %s245 = smul.addr %s244, 8
        %s246 = scalar_lea.vmem %s3, %s245
        %p247 = pneg %p122
        %p248 = pneg %p119
        %p249 = pneg %p143
        %p250 = pneg %p140
        %p251 = pneg %p171
        %p252 = pneg %p168
        %s253 = sand.u32 %s158, 1
        %s254 = scalar_lea.sflag [#allocation3], %s253
        %s255 = sand.u32 %s158, 1
        %s256 = smul.addr %s255, 32
        %s257 = scalar_lea.vmem [#allocation2], %s256
        %p258 = scmp.lt.s32.totalorder %s23, 1
        %s259 = scalar_select %p258, %s23, 1
        %s260 = smul.addr %s259, 20
        %s261 = smul.addr %s260, 4
        %s262 = scalar_lea.vmem %s0, %s261
        %s263 = smul.u32 4, %s24
        %p264 = scmp.lt.s32.totalorder %s23, 1
        %s265 = scalar_select %p264, %s23, 1
        %p266 = scmp.lt.s32.totalorder %s263, 3
        %s267 = scalar_select %p266, %s263, 3
        %s268 = smul.addr %s265, 4
        %s269 = sadd.s32 %s267, %s268
        %s270 = smul.addr %s269, 8
        %s271 = scalar_lea.vmem %s3, %s270
        %s272 = smul.u32 4, %s24
        %s273 = smul.u32 4, %s24
        %s275 = smul.u32 %s24, 32
        %s276 = sshra.s32 %s275, 3
        %s277 = sand.u32 %s275, 7
        %s278 = smul.addr %s276, 4
        %s279 = scalar_lea.vmem %s262, %s278
        %v280 = vld [vmem:[%s279] sm:$0xf]
        %v281 = vld [vmem:[%s279 + $0x4] sm:$0xf]
        %v282 = vld [vmem:[%s279 + $0x8] sm:$0xf]
        %v283 = vld [vmem:[%s279 + $0xc] sm:$0xf]
        %v284 = vld [vmem:[%s1] sm:$0xf]
        %v285 = vld [vmem:[%s1 + $0x4] sm:$0xf]
        %v286 = vld [vmem:[%s1 + $0x8] sm:$0xf]
        %v287 = vld [vmem:[%s1 + $0xc] sm:$0xf]
        %v288 = vld [vmem:[%s1 + $0x10] sm:$0xf]
        %v289 = vld [vmem:[%s1 + $0x14] sm:$0xf]
        %v290 = vld [vmem:[%s1 + $0x18] sm:$0xf]
        %v291 = vld [vmem:[%s1 + $0x1c] sm:$0xf]
        %v292 = vld [vmem:[%s1 + $0x20] sm:$0xf]
        %v293 = vld [vmem:[%s1 + $0x24] sm:$0xf]
        %v294 = vld [vmem:[%s1 + $0x28] sm:$0xf]
        %v295 = vld [vmem:[%s1 + $0x2c] sm:$0xf]
        %v296 = vld [vmem:[%s1 + $0x30] sm:$0xf]
        %v297 = vld [vmem:[%s1 + $0x34] sm:$0xf]
        %v298 = vld [vmem:[%s1 + $0x38] sm:$0xf]
        %v299 = vld [vmem:[%s1 + $0x3c] sm:$0xf]
        %s300 = sadd.s32 %s275, 32
        %s301 = sshra.s32 %s300, 3
        %s302 = sand.u32 %s300, 7
        %s303 = smul.addr %s301, 4
        %s304 = scalar_lea.vmem %s262, %s303
        %v305 = vld [vmem:[%s304] sm:$0xf]
        %v306 = vld [vmem:[%s304 + $0x4] sm:$0xf]
        %v307 = vld [vmem:[%s304 + $0x8] sm:$0xf]
        %v308 = vld [vmem:[%s304 + $0xc] sm:$0xf]
        %s309 = scalar_lea.vmem %s1, 64
        %v310 = vld [vmem:[%s309] sm:$0xf]
        %v311 = vld [vmem:[%s309 + $0x4] sm:$0xf]
        %v312 = vld [vmem:[%s309 + $0x8] sm:$0xf]
        %v313 = vld [vmem:[%s309 + $0xc] sm:$0xf]
        %v314 = vld [vmem:[%s309 + $0x10] sm:$0xf]
        %v315 = vld [vmem:[%s309 + $0x14] sm:$0xf]
        %v316 = vld [vmem:[%s309 + $0x18] sm:$0xf]
        %v317 = vld [vmem:[%s309 + $0x1c] sm:$0xf]
        %v318 = vld [vmem:[%s309 + $0x20] sm:$0xf]
        %v319 = vld [vmem:[%s309 + $0x24] sm:$0xf]
        %v320 = vld [vmem:[%s309 + $0x28] sm:$0xf]
        %v321 = vld [vmem:[%s309 + $0x2c] sm:$0xf]
        %v322 = vld [vmem:[%s309 + $0x30] sm:$0xf]
        %v323 = vld [vmem:[%s309 + $0x34] sm:$0xf]
        %v324 = vld [vmem:[%s309 + $0x38] sm:$0xf]
        %v325 = vld [vmem:[%s309 + $0x3c] sm:$0xf]
        %v330 = vunpack.c.l.b16 %v305
        %v331 = vunpack.c.l.b16 %v306
        %v332 = vunpack.c.l.b16 %v307
        %v333 = vunpack.c.l.b16 %v308
        %v334 = vpack.c.b16 %v331, %v330
        %v335 = vpack.c.b16 %v333, %v332
        %v354 = vunpack.c.l.b16 %v310
        %v355 = vunpack.c.l.b16 %v311
        %v356 = vunpack.c.l.b16 %v312
        %v357 = vunpack.c.l.b16 %v313
        %v358 = vunpack.c.l.b16 %v314
        %v359 = vunpack.c.l.b16 %v315
        %v360 = vunpack.c.l.b16 %v316
        %v361 = vunpack.c.l.b16 %v317
        %v362 = vunpack.c.l.b16 %v318
        %v363 = vunpack.c.l.b16 %v319
        %v364 = vunpack.c.l.b16 %v320
        %v365 = vunpack.c.l.b16 %v321
        %v366 = vunpack.c.l.b16 %v322
        %v367 = vunpack.c.l.b16 %v323
        %v368 = vunpack.c.l.b16 %v324
        %v369 = vunpack.c.l.b16 %v325
        %v370 = vpack.c.b16 %v355, %v354
        %v371 = vpack.c.b16 %v357, %v356
        %v372 = vpack.c.b16 %v359, %v358
        %v373 = vpack.c.b16 %v361, %v360
        %v374 = vpack.c.b16 %v363, %v362
        %v375 = vpack.c.b16 %v365, %v364
        %v376 = vpack.c.b16 %v367, %v366
        %v377 = vpack.c.b16 %v369, %v368
        %386 = vmatprep.subr.bf16.mxu0 0
        %387 = vmatpush1.bf16.msra.mxu0 %v370
        %388 = vmatprep.subr.bf16.mxu0 0
        %389 = vmatpush1.bf16.msra.mxu0 %v371
        %390 = vmatprep.subr.bf16.mxu0 0
        %391 = vmatpush1.bf16.msra.mxu0 %v372
        %392 = vmatprep.subr.bf16.mxu0 0
        %393 = vmatpush1.bf16.msra.mxu0 %v373
        %394 = vmatprep.subr.bf16.mxu0 0
        %395 = vmatpush1.bf16.msra.mxu0 %v374
        %396 = vmatprep.subr.bf16.mxu0 0
        %397 = vmatpush1.bf16.msra.mxu0 %v375
        %398 = vmatprep.subr.bf16.mxu0 0
        %399 = vmatpush1.bf16.msra.mxu0 %v376
        %400 = vmatprep.subr.bf16.mxu0 0
        %401 = vmatpush1.bf16.msra.mxu0 %v377
        %402 = vmatprep.subr.bf16.mxu0 0
        %403 = vmatpush1.bf16.msra.mxu0 0
        %404 = vmatprep.subr.bf16.mxu0 0
        %405 = vmatpush1.bf16.msra.mxu0 0
        %406 = vmatprep.subr.bf16.mxu0 0
        %407 = vmatpush1.bf16.msra.mxu0 0
        %408 = vmatprep.subr.bf16.mxu0 0
        %409 = vmatpush1.bf16.msra.mxu0 0
        %410 = vmatprep.subr.bf16.mxu0 0
        %411 = vmatpush1.bf16.msra.mxu0 0
        %412 = vmatprep.subr.bf16.mxu0 0
        %413 = vmatpush1.bf16.msra.mxu0 0
        %414 = vmatprep.subr.bf16.mxu0 0
        %415 = vmatpush1.bf16.msra.mxu0 0
        %416 = vmatprep.subr.bf16.mxu0 0
        %417 = vmatpush1.bf16.msra.mxu0 0
        %418 = vmatprep.mubr.bf16.mxu0 0
        %419 = vmatmul.mubr.bf16.gmra.mrb[0].mxu0 %v334
        %v420 = vpop.f32.mrb[0].mxu0
        %v421 = vadd.f32 0.0, %v420
        %v422 = vpop.f32.mrb[0].mxu0
        %v423 = vpop.f32.mrb[0].mxu0
        %v424 = vadd.f32 0.0, %v423
        %v425 = vpop.f32.mrb[0].mxu0
        %426 = vmatprep.mubr.bf16.mxu0 0
        %427 = vmatmul.mubr.bf16.gmra.mrb[0].mxu0 %v335
        %v428 = vpop.f32.mrb[0].mxu0
        %v429 = vadd.f32 0.0, %v428
        %v430 = vpop.f32.mrb[0].mxu0
        %v431 = vpop.f32.mrb[0].mxu0
        %v432 = vadd.f32 0.0, %v431
        %v433 = vpop.f32.mrb[0].mxu0
        %434 = vdwg.mxu0
        %v439 = vunpack.c.l.b16 %v280
        %v440 = vunpack.c.l.b16 %v281
        %v441 = vunpack.c.l.b16 %v282
        %v442 = vunpack.c.l.b16 %v283
        %v443 = vpack.c.b16 %v440, %v439
        %v444 = vpack.c.b16 %v442, %v441
        %v463 = vunpack.c.l.b16 %v284
        %v464 = vunpack.c.l.b16 %v285
        %v465 = vunpack.c.l.b16 %v286
        %v466 = vunpack.c.l.b16 %v287
        %v467 = vunpack.c.l.b16 %v288
        %v468 = vunpack.c.l.b16 %v289
        %v469 = vunpack.c.l.b16 %v290
        %v470 = vunpack.c.l.b16 %v291
        %v471 = vunpack.c.l.b16 %v292
        %v472 = vunpack.c.l.b16 %v293
        %v473 = vunpack.c.l.b16 %v294
        %v474 = vunpack.c.l.b16 %v295
        %v475 = vunpack.c.l.b16 %v296
        %v476 = vunpack.c.l.b16 %v297
        %v477 = vunpack.c.l.b16 %v298
        %v478 = vunpack.c.l.b16 %v299
        %v479 = vpack.c.b16 %v464, %v463
        %v480 = vpack.c.b16 %v466, %v465
        %v481 = vpack.c.b16 %v468, %v467
        %v482 = vpack.c.b16 %v470, %v469
        %v483 = vpack.c.b16 %v472, %v471
        %v484 = vpack.c.b16 %v474, %v473
        %v485 = vpack.c.b16 %v476, %v475
        %v486 = vpack.c.b16 %v478, %v477
        %495 = vmatprep.subr.bf16.mxu0 0
        %496 = vmatpush1.bf16.msra.mxu0 %v479
        %497 = vmatprep.subr.bf16.mxu0 0
        %498 = vmatpush1.bf16.msra.mxu0 %v480
        %499 = vmatprep.subr.bf16.mxu0 0
        %500 = vmatpush1.bf16.msra.mxu0 %v481
        %501 = vmatprep.subr.bf16.mxu0 0
        %502 = vmatpush1.bf16.msra.mxu0 %v482
        %503 = vmatprep.subr.bf16.mxu0 0
        %504 = vmatpush1.bf16.msra.mxu0 %v483
        %505 = vmatprep.subr.bf16.mxu0 0
        %506 = vmatpush1.bf16.msra.mxu0 %v484
        %507 = vmatprep.subr.bf16.mxu0 0
        %508 = vmatpush1.bf16.msra.mxu0 %v485
        %509 = vmatprep.subr.bf16.mxu0 0
        %510 = vmatpush1.bf16.msra.mxu0 %v486
        %511 = vmatprep.subr.bf16.mxu0 0
        %512 = vmatpush1.bf16.msra.mxu0 0
        %513 = vmatprep.subr.bf16.mxu0 0
        %514 = vmatpush1.bf16.msra.mxu0 0
        %515 = vmatprep.subr.bf16.mxu0 0
        %516 = vmatpush1.bf16.msra.mxu0 0
        %517 = vmatprep.subr.bf16.mxu0 0
        %518 = vmatpush1.bf16.msra.mxu0 0
        %519 = vmatprep.subr.bf16.mxu0 0
        %520 = vmatpush1.bf16.msra.mxu0 0
        %521 = vmatprep.subr.bf16.mxu0 0
        %522 = vmatpush1.bf16.msra.mxu0 0
        %523 = vmatprep.subr.bf16.mxu0 0
        %524 = vmatpush1.bf16.msra.mxu0 0
        %525 = vmatprep.subr.bf16.mxu0 0
        %526 = vmatpush1.bf16.msra.mxu0 0
        %527 = vmatprep.mubr.bf16.mxu0 0
        %528 = vmatmul.mubr.bf16.gmra.mrb[0].mxu0 %v443
        %v529 = vpop.f32.mrb[0].mxu0
        %v530 = vadd.f32 %v421, %v529
        %v531 = vpop.f32.mrb[0].mxu0
        %v532 = vpop.f32.mrb[0].mxu0
        %v533 = vadd.f32 %v424, %v532
        %v534 = vpop.f32.mrb[0].mxu0
        %535 = vmatprep.mubr.bf16.mxu0 0
        %536 = vmatmul.mubr.bf16.gmra.mrb[0].mxu0 %v444
        %v537 = vpop.f32.mrb[0].mxu0
        %v538 = vadd.f32 %v429, %v537
        %v539 = vpop.f32.mrb[0].mxu0
        %v540 = vpop.f32.mrb[0].mxu0
        %v541 = vadd.f32 %v432, %v540
        %v542 = vpop.f32.mrb[0].mxu0
        %543 = vdwg.mxu0
        %s544 = sadd.s32 %s275, 64
        %s545 = sshra.s32 %s544, 3
        %s546 = sand.u32 %s544, 7
        %s547 = smul.addr %s545, 4
        %s548 = scalar_lea.vmem %s262, %s547
        %v549 = vld [vmem:[%s548] sm:$0xf]
        %v550 = vld [vmem:[%s548 + $0x4] sm:$0xf]
        %v551 = vld [vmem:[%s548 + $0x8] sm:$0xf]
        %v552 = vld [vmem:[%s548 + $0xc] sm:$0xf]
        %s553 = scalar_lea.vmem %s1, 128
        %v554 = vld [vmem:[%s553] sm:$0xf]
        %v555 = vld [vmem:[%s553 + $0x4] sm:$0xf]
        %v556 = vld [vmem:[%s553 + $0x8] sm:$0xf]
        %v557 = vld [vmem:[%s553 + $0xc] sm:$0xf]
        %v558 = vld [vmem:[%s553 + $0x10] sm:$0xf]
        %v559 = vld [vmem:[%s553 + $0x14] sm:$0xf]
        %v560 = vld [vmem:[%s553 + $0x18] sm:$0xf]
        %v561 = vld [vmem:[%s553 + $0x1c] sm:$0xf]
        %v562 = vld [vmem:[%s553 + $0x20] sm:$0xf]
        %v563 = vld [vmem:[%s553 + $0x24] sm:$0xf]
        %v564 = vld [vmem:[%s553 + $0x28] sm:$0xf]
        %v565 = vld [vmem:[%s553 + $0x2c] sm:$0xf]
        %v566 = vld [vmem:[%s553 + $0x30] sm:$0xf]
        %v567 = vld [vmem:[%s553 + $0x34] sm:$0xf]
        %v568 = vld [vmem:[%s553 + $0x38] sm:$0xf]
        %v569 = vld [vmem:[%s553 + $0x3c] sm:$0xf]
        %v574 = vunpack.c.l.b16 %v549
        %v575 = vunpack.c.l.b16 %v550
        %v576 = vunpack.c.l.b16 %v551
        %v577 = vunpack.c.l.b16 %v552
        %v578 = vpack.c.b16 %v575, %v574
        %v579 = vpack.c.b16 %v577, %v576
        %v598 = vunpack.c.l.b16 %v554
        %v599 = vunpack.c.l.b16 %v555
        %v600 = vunpack.c.l.b16 %v556
        %v601 = vunpack.c.l.b16 %v557
        %v602 = vunpack.c.l.b16 %v558
        %v603 = vunpack.c.l.b16 %v559
        %v604 = vunpack.c.l.b16 %v560
        %v605 = vunpack.c.l.b16 %v561
        %v606 = vunpack.c.l.b16 %v562
        %v607 = vunpack.c.l.b16 %v563
        %v608 = vunpack.c.l.b16 %v564
        %v609 = vunpack.c.l.b16 %v565
        %v610 = vunpack.c.l.b16 %v566
        %v611 = vunpack.c.l.b16 %v567
        %v612 = vunpack.c.l.b16 %v568
        %v613 = vunpack.c.l.b16 %v569
        %v614 = vpack.c.b16 %v599, %v598
        %v615 = vpack.c.b16 %v601, %v600
        %v616 = vpack.c.b16 %v603, %v602
        %v617 = vpack.c.b16 %v605, %v604
        %v618 = vpack.c.b16 %v607, %v606
        %v619 = vpack.c.b16 %v609, %v608
        %v620 = vpack.c.b16 %v611, %v610
        %v621 = vpack.c.b16 %v613, %v612
        %630 = vmatprep.subr.bf16.mxu0 0
        %631 = vmatpush1.bf16.msra.mxu0 %v614
        %632 = vmatprep.subr.bf16.mxu0 0
        %633 = vmatpush1.bf16.msra.mxu0 %v615
        %634 = vmatprep.subr.bf16.mxu0 0
        %635 = vmatpush1.bf16.msra.mxu0 %v616
        %636 = vmatprep.subr.bf16.mxu0 0
        %637 = vmatpush1.bf16.msra.mxu0 %v617
        %638 = vmatprep.subr.bf16.mxu0 0
        %639 = vmatpush1.bf16.msra.mxu0 %v618
        %640 = vmatprep.subr.bf16.mxu0 0
        %641 = vmatpush1.bf16.msra.mxu0 %v619
        %642 = vmatprep.subr.bf16.mxu0 0
        %643 = vmatpush1.bf16.msra.mxu0 %v620
        %644 = vmatprep.subr.bf16.mxu0 0
        %645 = vmatpush1.bf16.msra.mxu0 %v621
        %646 = vmatprep.subr.bf16.mxu0 0
        %647 = vmatpush1.bf16.msra.mxu0 0
        %648 = vmatprep.subr.bf16.mxu0 0
        %649 = vmatpush1.bf16.msra.mxu0 0
        %650 = vmatprep.subr.bf16.mxu0 0
        %651 = vmatpush1.bf16.msra.mxu0 0
        %652 = vmatprep.subr.bf16.mxu0 0
        %653 = vmatpush1.bf16.msra.mxu0 0
        %654 = vmatprep.subr.bf16.mxu0 0
        %655 = vmatpush1.bf16.msra.mxu0 0
        %656 = vmatprep.subr.bf16.mxu0 0
        %657 = vmatpush1.bf16.msra.mxu0 0
        %658 = vmatprep.subr.bf16.mxu0 0
        %659 = vmatpush1.bf16.msra.mxu0 0
        %660 = vmatprep.subr.bf16.mxu0 0
        %661 = vmatpush1.bf16.msra.mxu0 0
        %662 = vmatprep.mubr.bf16.mxu0 0
        %663 = vmatmul.mubr.bf16.gmra.mrb[0].mxu0 %v578
        %v664 = vpop.f32.mrb[0].mxu0
        %v665 = vadd.f32 0.0, %v664
        %v666 = vpop.f32.mrb[0].mxu0
        %v667 = vpop.f32.mrb[0].mxu0
        %v668 = vadd.f32 0.0, %v667
        %v669 = vpop.f32.mrb[0].mxu0
        %670 = vmatprep.mubr.bf16.mxu0 0
        %671 = vmatmul.mubr.bf16.gmra.mrb[0].mxu0 %v579
        %v672 = vpop.f32.mrb[0].mxu0
        %v673 = vadd.f32 0.0, %v672
        %v674 = vpop.f32.mrb[0].mxu0
        %v675 = vpop.f32.mrb[0].mxu0
        %v676 = vadd.f32 0.0, %v675
        %v677 = vpop.f32.mrb[0].mxu0
        %678 = vdwg.mxu0
        %v679 = vadd.f32 %v530, %v665
        %v680 = vadd.f32 %v533, %v668
        %v681 = vadd.f32 %v538, %v673
        %v682 = vadd.f32 %v541, %v676
        %s683 = sadd.s32 %s275, 96
        %s684 = sshra.s32 %s683, 3
        %s685 = sand.u32 %s683, 7
        %s686 = smul.addr %s684, 4
        %s687 = scalar_lea.vmem %s262, %s686
        %v688 = vld [vmem:[%s687] sm:$0xf]
        %v689 = vld [vmem:[%s687 + $0x4] sm:$0xf]
        %v690 = vld [vmem:[%s687 + $0x8] sm:$0xf]
        %v691 = vld [vmem:[%s687 + $0xc] sm:$0xf]
        %s692 = scalar_lea.vmem %s1, 192
        %v693 = vld [vmem:[%s692] sm:$0xf]
        %v694 = vld [vmem:[%s692 + $0x4] sm:$0xf]
        %v695 = vld [vmem:[%s692 + $0x8] sm:$0xf]
        %v696 = vld [vmem:[%s692 + $0xc] sm:$0xf]
        %v697 = vld [vmem:[%s692 + $0x10] sm:$0xf]
        %v698 = vld [vmem:[%s692 + $0x14] sm:$0xf]
        %v699 = vld [vmem:[%s692 + $0x18] sm:$0xf]
        %v700 = vld [vmem:[%s692 + $0x1c] sm:$0xf]
        %v701 = vld [vmem:[%s692 + $0x20] sm:$0xf]
        %v702 = vld [vmem:[%s692 + $0x24] sm:$0xf]
        %v703 = vld [vmem:[%s692 + $0x28] sm:$0xf]
        %v704 = vld [vmem:[%s692 + $0x2c] sm:$0xf]
        %v705 = vld [vmem:[%s692 + $0x30] sm:$0xf]
        %v706 = vld [vmem:[%s692 + $0x34] sm:$0xf]
        %v707 = vld [vmem:[%s692 + $0x38] sm:$0xf]
        %v708 = vld [vmem:[%s692 + $0x3c] sm:$0xf]
        %v713 = vunpack.c.l.b16 %v688
        %v714 = vunpack.c.l.b16 %v689
        %v715 = vunpack.c.l.b16 %v690
        %v716 = vunpack.c.l.b16 %v691
        %v717 = vpack.c.b16 %v714, %v713
        %v718 = vpack.c.b16 %v716, %v715
        %v737 = vunpack.c.l.b16 %v693
        %v738 = vunpack.c.l.b16 %v694
        %v739 = vunpack.c.l.b16 %v695
        %v740 = vunpack.c.l.b16 %v696
        %v741 = vunpack.c.l.b16 %v697
        %v742 = vunpack.c.l.b16 %v698
        %v743 = vunpack.c.l.b16 %v699
        %v744 = vunpack.c.l.b16 %v700
        %v745 = vunpack.c.l.b16 %v701
        %v746 = vunpack.c.l.b16 %v702
        %v747 = vunpack.c.l.b16 %v703
        %v748 = vunpack.c.l.b16 %v704
        %v749 = vunpack.c.l.b16 %v705
        %v750 = vunpack.c.l.b16 %v706
        %v751 = vunpack.c.l.b16 %v707
        %v752 = vunpack.c.l.b16 %v708
        %v753 = vpack.c.b16 %v738, %v737
        %v754 = vpack.c.b16 %v740, %v739
        %v755 = vpack.c.b16 %v742, %v741
        %v756 = vpack.c.b16 %v744, %v743
        %v757 = vpack.c.b16 %v746, %v745
        %v758 = vpack.c.b16 %v748, %v747
        %v759 = vpack.c.b16 %v750, %v749
        %v760 = vpack.c.b16 %v752, %v751
        %769 = vmatprep.subr.bf16.mxu0 0
        %770 = vmatpush1.bf16.msra.mxu0 %v753
        %771 = vmatprep.subr.bf16.mxu0 0
        %772 = vmatpush1.bf16.msra.mxu0 %v754
        %773 = vmatprep.subr.bf16.mxu0 0
        %774 = vmatpush1.bf16.msra.mxu0 %v755
        %775 = vmatprep.subr.bf16.mxu0 0
        %776 = vmatpush1.bf16.msra.mxu0 %v756
        %777 = vmatprep.subr.bf16.mxu0 0
        %778 = vmatpush1.bf16.msra.mxu0 %v757
        %779 = vmatprep.subr.bf16.mxu0 0
        %780 = vmatpush1.bf16.msra.mxu0 %v758
        %781 = vmatprep.subr.bf16.mxu0 0
        %782 = vmatpush1.bf16.msra.mxu0 %v759
        %783 = vmatprep.subr.bf16.mxu0 0
        %784 = vmatpush1.bf16.msra.mxu0 %v760
        %785 = vmatprep.subr.bf16.mxu0 0
        %786 = vmatpush1.bf16.msra.mxu0 0
        %787 = vmatprep.subr.bf16.mxu0 0
        %788 = vmatpush1.bf16.msra.mxu0 0
        %789 = vmatprep.subr.bf16.mxu0 0
        %790 = vmatpush1.bf16.msra.mxu0 0
        %791 = vmatprep.subr.bf16.mxu0 0
        %792 = vmatpush1.bf16.msra.mxu0 0
        %793 = vmatprep.subr.bf16.mxu0 0
        %794 = vmatpush1.bf16.msra.mxu0 0
        %795 = vmatprep.subr.bf16.mxu0 0
        %796 = vmatpush1.bf16.msra.mxu0 0
        %797 = vmatprep.subr.bf16.mxu0 0
        %798 = vmatpush1.bf16.msra.mxu0 0
        %799 = vmatprep.subr.bf16.mxu0 0
        %800 = vmatpush1.bf16.msra.mxu0 0
        %801 = vmatprep.mubr.bf16.mxu0 0
        %802 = vmatmul.mubr.bf16.gmra.mrb[0].mxu0 %v717
        %v803 = vpop.f32.mrb[0].mxu0
        %v804 = vadd.f32 0.0, %v803
        %v805 = vpop.f32.mrb[0].mxu0
        %v806 = vpop.f32.mrb[0].mxu0
        %v807 = vadd.f32 0.0, %v806
        %v808 = vpop.f32.mrb[0].mxu0
        %809 = vmatprep.mubr.bf16.mxu0 0
        %810 = vmatmul.mubr.bf16.gmra.mrb[0].mxu0 %v718
        %v811 = vpop.f32.mrb[0].mxu0
        %v812 = vadd.f32 0.0, %v811
        %v813 = vpop.f32.mrb[0].mxu0
        %v814 = vpop.f32.mrb[0].mxu0
        %v815 = vadd.f32 0.0, %v814
        %v816 = vpop.f32.mrb[0].mxu0
        %817 = vdwg.mxu0
        %v818 = vadd.f32 %v679, %v804
        %v819 = vadd.f32 %v680, %v807
        %v820 = vadd.f32 %v681, %v812
        %v821 = vadd.f32 %v682, %v815
        %s822 = sadd.s32 %s275, 128
        %s823 = sshra.s32 %s822, 3
        %s824 = sand.u32 %s822, 7
        %s825 = smul.addr %s823, 4
        %s826 = scalar_lea.vmem %s262, %s825
        %v827 = vld [vmem:[%s826] sm:$0xf]
        %v828 = vld [vmem:[%s826 + $0x4] sm:$0xf]
        %v829 = vld [vmem:[%s826 + $0x8] sm:$0xf]
        %v830 = vld [vmem:[%s826 + $0xc] sm:$0xf]
        %s831 = scalar_lea.vmem %s1, 256
        %v832 = vld [vmem:[%s831] sm:$0xf]
        %v833 = vld [vmem:[%s831 + $0x4] sm:$0xf]
        %v834 = vld [vmem:[%s831 + $0x8] sm:$0xf]
        %v835 = vld [vmem:[%s831 + $0xc] sm:$0xf]
        %v836 = vld [vmem:[%s831 + $0x10] sm:$0xf]
        %v837 = vld [vmem:[%s831 + $0x14] sm:$0xf]
        %v838 = vld [vmem:[%s831 + $0x18] sm:$0xf]
        %v839 = vld [vmem:[%s831 + $0x1c] sm:$0xf]
        %v840 = vld [vmem:[%s831 + $0x20] sm:$0xf]
        %v841 = vld [vmem:[%s831 + $0x24] sm:$0xf]
        %v842 = vld [vmem:[%s831 + $0x28] sm:$0xf]
        %v843 = vld [vmem:[%s831 + $0x2c] sm:$0xf]
        %v844 = vld [vmem:[%s831 + $0x30] sm:$0xf]
        %v845 = vld [vmem:[%s831 + $0x34] sm:$0xf]
        %v846 = vld [vmem:[%s831 + $0x38] sm:$0xf]
        %v847 = vld [vmem:[%s831 + $0x3c] sm:$0xf]
        %v852 = vunpack.c.l.b16 %v827
        %v853 = vunpack.c.l.b16 %v828
        %v854 = vunpack.c.l.b16 %v829
        %v855 = vunpack.c.l.b16 %v830
        %v856 = vpack.c.b16 %v853, %v852
        %v857 = vpack.c.b16 %v855, %v854
        %v876 = vunpack.c.l.b16 %v832
        %v877 = vunpack.c.l.b16 %v833
        %v878 = vunpack.c.l.b16 %v834
        %v879 = vunpack.c.l.b16 %v835
        %v880 = vunpack.c.l.b16 %v836
        %v881 = vunpack.c.l.b16 %v837
        %v882 = vunpack.c.l.b16 %v838
        %v883 = vunpack.c.l.b16 %v839
        %v884 = vunpack.c.l.b16 %v840
        %v885 = vunpack.c.l.b16 %v841
        %v886 = vunpack.c.l.b16 %v842
        %v887 = vunpack.c.l.b16 %v843
        %v888 = vunpack.c.l.b16 %v844
        %v889 = vunpack.c.l.b16 %v845
        %v890 = vunpack.c.l.b16 %v846
        %v891 = vunpack.c.l.b16 %v847
        %v892 = vpack.c.b16 %v877, %v876
        %v893 = vpack.c.b16 %v879, %v878
        %v894 = vpack.c.b16 %v881, %v880
        %v895 = vpack.c.b16 %v883, %v882
        %v896 = vpack.c.b16 %v885, %v884
        %v897 = vpack.c.b16 %v887, %v886
        %v898 = vpack.c.b16 %v889, %v888
        %v899 = vpack.c.b16 %v891, %v890
        %908 = vmatprep.subr.bf16.mxu0 0
        %909 = vmatpush1.bf16.msra.mxu0 %v892
        %910 = vmatprep.subr.bf16.mxu0 0
        %911 = vmatpush1.bf16.msra.mxu0 %v893
        %912 = vmatprep.subr.bf16.mxu0 0
        %913 = vmatpush1.bf16.msra.mxu0 %v894
        %914 = vmatprep.subr.bf16.mxu0 0
        %915 = vmatpush1.bf16.msra.mxu0 %v895
        %916 = vmatprep.subr.bf16.mxu0 0
        %917 = vmatpush1.bf16.msra.mxu0 %v896
        %918 = vmatprep.subr.bf16.mxu0 0
        %919 = vmatpush1.bf16.msra.mxu0 %v897
        %920 = vmatprep.subr.bf16.mxu0 0
        %921 = vmatpush1.bf16.msra.mxu0 %v898
        %922 = vmatprep.subr.bf16.mxu0 0
        %923 = vmatpush1.bf16.msra.mxu0 %v899
        %924 = vmatprep.subr.bf16.mxu0 0
        %925 = vmatpush1.bf16.msra.mxu0 0
        %926 = vmatprep.subr.bf16.mxu0 0
        %927 = vmatpush1.bf16.msra.mxu0 0
        %928 = vmatprep.subr.bf16.mxu0 0
        %929 = vmatpush1.bf16.msra.mxu0 0
        %930 = vmatprep.subr.bf16.mxu0 0
        %931 = vmatpush1.bf16.msra.mxu0 0
        %932 = vmatprep.subr.bf16.mxu0 0
        %933 = vmatpush1.bf16.msra.mxu0 0
        %934 = vmatprep.subr.bf16.mxu0 0
        %935 = vmatpush1.bf16.msra.mxu0 0
        %936 = vmatprep.subr.bf16.mxu0 0
        %937 = vmatpush1.bf16.msra.mxu0 0
        %938 = vmatprep.subr.bf16.mxu0 0
        %939 = vmatpush1.bf16.msra.mxu0 0
        %940 = vmatprep.mubr.bf16.mxu0 0
        %941 = vmatmul.mubr.bf16.gmra.mrb[0].mxu0 %v856
        %v942 = vpop.f32.mrb[0].mxu0
        %v943 = vadd.f32 0.0, %v942
        %v944 = vpop.f32.mrb[0].mxu0
        %v945 = vpop.f32.mrb[0].mxu0
        %v946 = vadd.f32 0.0, %v945
        %v947 = vpop.f32.mrb[0].mxu0
        %948 = vmatprep.mubr.bf16.mxu0 0
        %949 = vmatmul.mubr.bf16.gmra.mrb[0].mxu0 %v857
        %v950 = vpop.f32.mrb[0].mxu0
        %v951 = vadd.f32 0.0, %v950
        %v952 = vpop.f32.mrb[0].mxu0
        %v953 = vpop.f32.mrb[0].mxu0
        %v954 = vadd.f32 0.0, %v953
        %v955 = vpop.f32.mrb[0].mxu0
        %956 = vdwg.mxu0
        %v957 = vadd.f32 %v818, %v943
        %v958 = vadd.f32 %v819, %v946
        %v959 = vadd.f32 %v820, %v951
        %v960 = vadd.f32 %v821, %v954
        %v961 = vld [vmem:[%s2] sm:$0x1]
        %v963 = vlaneseq
        %v964 = vshrl.u32 %v963, 7
        %v965 = vsub.s32 0, %v964
        %v966 = vrot.slane %v961, %v965
        %v968 = vadd.f32 %v957, %v966
        %v969 = vadd.f32 %v958, %v966
        %v970 = vadd.f32 %v959, %v966
        %v971 = vadd.f32 %v960, %v966
        %v972 = vmax.f32 %v968, 0.0
        %v973 = vmax.f32 %v969, 0.0
        %v974 = vmax.f32 %v970, 0.0
        %v975 = vmax.f32 %v971, 0.0
        %v976 = vld [vmem:[%s271] sm:$0xff]
        %v977 = vld [vmem:[%s271 + $0x8] sm:$0xff]
        %v978 = vld [vmem:[%s271 + $0x10] sm:$0xff]
        %v979 = vld [vmem:[%s271 + $0x18] sm:$0xff]
        %v980 = vpack.c.bf16 %v977, %v976
        %v981 = vpack.c.bf16 %v979, %v978
        %v982 = vld [vmem:[%s4] sm:$0x3]
        %vm983 = vcmask 31744
        %v985 = vsel %vm983, %v980, 0
        %v988 = vsel %vm983, %v981, 0
        %vm990 = vcmask 1041408
        %v992 = vsel %vm990, %v982, 0
        %994 = vmatprep.subr.bf16.mxu0 0
        %995 = vmatpush1.bf16.msra.mxu0 %v992
        %996 = vmatprep.subr.bf16.mxu0 0
        %997 = vmatpush1.bf16.msra.mxu0 0
        %998 = vmatprep.subr.bf16.mxu0 0
        %999 = vmatpush1.bf16.msra.mxu0 0
        %1000 = vmatprep.subr.bf16.mxu0 0
        %1001 = vmatpush1.bf16.msra.mxu0 0
        %1002 = vmatprep.subr.bf16.mxu0 0
        %1003 = vmatpush1.bf16.msra.mxu0 0
        %1004 = vmatprep.subr.bf16.mxu0 0
        %1005 = vmatpush1.bf16.msra.mxu0 0
        %1006 = vmatprep.subr.bf16.mxu0 0
        %1007 = vmatpush1.bf16.msra.mxu0 0
        %1008 = vmatprep.subr.bf16.mxu0 0
        %1009 = vmatpush1.bf16.msra.mxu0 0
        %1010 = vmatprep.subr.bf16.mxu0 0
        %1011 = vmatpush1.bf16.msra.mxu0 0
        %1012 = vmatprep.subr.bf16.mxu0 0
        %1013 = vmatpush1.bf16.msra.mxu0 0
        %1014 = vmatprep.subr.bf16.mxu0 0
        %1015 = vmatpush1.bf16.msra.mxu0 0
        %1016 = vmatprep.subr.bf16.mxu0 0
        %1017 = vmatpush1.bf16.msra.mxu0 0
        %1018 = vmatprep.subr.bf16.mxu0 0
        %1019 = vmatpush1.bf16.msra.mxu0 0
        %1020 = vmatprep.subr.bf16.mxu0 0
        %1021 = vmatpush1.bf16.msra.mxu0 0
        %1022 = vmatprep.subr.bf16.mxu0 0
        %1023 = vmatpush1.bf16.msra.mxu0 0
        %1024 = vmatprep.subr.bf16.mxu0 0
        %1025 = vmatpush1.bf16.msra.mxu0 0
        %1026 = vmatprep.mubr.bf16.mxu0 0
        %1027 = vmatmul.mubr.bf16.gmra.mrb[0].mxu0 %v985
        %v1028 = vpop.f32.mrb[0].mxu0
        %v1029 = vadd.f32 0.0, %v1028
        %v1030 = vpop.f32.mrb[0].mxu0
        %v1031 = vpop.f32.mrb[0].mxu0
        %v1032 = vadd.f32 0.0, %v1031
        %v1033 = vpop.f32.mrb[0].mxu0
        %1034 = vmatprep.mubr.bf16.mxu0 0
        %1035 = vmatmul.mubr.bf16.gmra.mrb[0].mxu0 %v988
        %v1036 = vpop.f32.mrb[0].mxu0
        %v1037 = vadd.f32 0.0, %v1036
        %v1038 = vpop.f32.mrb[0].mxu0
        %v1039 = vpop.f32.mrb[0].mxu0
        %v1040 = vadd.f32 0.0, %v1039
        %v1041 = vpop.f32.mrb[0].mxu0
        %1042 = vdwg.mxu0
        %v1043 = vadd.f32 %v972, %v1029
        %v1044 = vadd.f32 %v973, %v1032
        %v1045 = vadd.f32 %v974, %v1037
        %v1046 = vadd.f32 %v975, %v1040
        %vm1047 = vcmask 261120
        %1048 = vst.msk [vmem:[%s257] sm:$0xff] %vm1047, %v1043
        %1049 = vst.msk [vmem:[%s257 + $0x8] sm:$0xff] %vm1047, %v1044
        %1050 = vst.msk [vmem:[%s257 + $0x10] sm:$0xff] %vm1047, %v1045
        %1051 = vst.msk [vmem:[%s257 + $0x18] sm:$0xff] %vm1047, %v1046
        %s1052 = sand.u32 %s158, 1
        %s1053 = scalar_lea.sflag [#allocation3], %s1052
        %s1054 = sand.u32 %s158, 1
        %s1055 = smul.addr %s1054, 32
        %s1056 = scalar_lea.vmem [#allocation2], %s1055
        // Predicated region
        $region41: #{tpu_custom_call.1} parent=39 // pred_check
          %p1057 = pneg %p168
        $region42: #{tpu_custom_call.1} parent=39 // pred_check_branch
          %1059 = sbr.rel (%p1057) target = $region44
        $region43: #{tpu_custom_call.1} parent=39 // pred_region
          %s1060 = smul.u32 4, %s24
          %s1062 = ssub.s32 512, 512
          %1063 = vsyncadd %s1053, %s1062
          %s1064 = smul.addr %s23, 4
          %s1065 = sadd.s32 %s1060, %s1064
          %s1066 = smul.addr %s1065, 128
          %s1067 = scalar_lea.hbm %s5, %s1066
          %s1068 = sshll.u32 %s1056, 4
          %s1069 = int_to_ptr.vmem [resolvable:$true] %s1068
          %1074 = dma.vmem_to_hbm [thread:$0]  %s1069, 512, %s1067, %s1053, 128, 128, 8
        $region44: #{tpu_custom_call.1} parent=39 // pred_fallthru
          _
      $region40: #{tpu_custom_call.1} parent=5 // pred_fallthru
        _
      %p1075 = scmp.le.s32.totalorder 2, %s14
      // Predicated region
      $region45: #{tpu_custom_call.1} parent=5 // pred_check
        %p1076 = pneg %p1075
      $region46: #{tpu_custom_call.1} parent=5 // pred_check_branch
        %1078 = sbr.rel (%p1076) target = $region48
      $region47: #{tpu_custom_call.1} parent=5 // pred_region
        %s1079 = ssub.s32 %s14, 2
        // Predicated region
        $region49: #{tpu_custom_call.1} parent=47 // pred_check
          %p1080 = pneg %p174
        $region50: #{tpu_custom_call.1} parent=47 // pred_check_branch
          %1082 = sbr.rel (%p1080) target = $region52
        $region51: #{tpu_custom_call.1} parent=47 // pred_region
          %s1083 = sand.u32 %s159, 1
          %s1084 = scalar_lea.sflag [#allocation3], %s1083
          %s1085 = sand.u32 %s159, 1
          %s1086 = smul.addr %s1085, 32
          %s1087 = scalar_lea.vmem [#allocation2], %s1086
          %1088 = dma.done %s1084, 512
        $region52: #{tpu_custom_call.1} parent=47 // pred_fallthru
          _
      $region48: #{tpu_custom_call.1} parent=5 // pred_fallthru
        _
    $region6: #{tpu_custom_call.1} parent=1 // loop_footer
      %s18 = sadd.s32 1, %s14
    $region7: #{tpu_custom_call.1} parent=1 // loop_footer_branch
      %13 = sbr.rel target = $region3
    $region8: #{tpu_custom_call.1} parent=1 // loop_exit
      _
    %1089 = vsyncpa [#allocation3], 1
    %s1090 = scalar_lea.sflag [#allocation3], 1
    %1091 = vsyncpa %s1090, 1

</llo_original>
